<compile_context>
chip_gen: v5e
topology: v5e:2x2
jax: 0.10.0
libtpu: 0.0.40
codegen_flags: <defaults>
</compile_context>

<pallas_src>
import functools
import math

import jax
import jax.numpy as jnp
from jax.experimental import pallas as pl
from jax.experimental.pallas import tpu as pltpu

_INV_SQRT2 = 1.0 / math.sqrt(2.0)
_SQRT_2_OVER_PI = math.sqrt(2.0 / math.pi)


def _gelu(h, exact):
    if exact:
        # Exact erf GELU: matches PyTorch nn.GELU() (approximate='none').
        return 0.5 * h * (1.0 + jax.lax.erf(h * _INV_SQRT2))
    # tanh approximation: lowers to the otherwise-idle EUP slot (not bit-identical).
    return 0.5 * h * (1.0 + jnp.tanh(_SQRT_2_OVER_PI * (h + 0.044715 * h * h * h)))


# ---------------------------------------------------------------------------
# Generation-aware VMEM sizing.
# ---------------------------------------------------------------------------
def _vmem_budget_and_limit():
    """Returns (tile-accounting budget, vmem_limit_bytes) for this TPU generation."""
    try:
        cap = int(pltpu.get_tpu_info().vmem_capacity_bytes)
    except Exception:
        cap = 64 * 1024 * 1024  # conservative (v7x per-TC) fallback
    if cap >= 96 * 1024 * 1024:
        # v5e / v6e: 128 MiB physical per TensorCore.
        return 56 * 1024 * 1024, 80 * 1024 * 1024
    # v7x: 64 MiB physical per TensorCore — keep headroom for double buffers/scratch.
    return 40 * 1024 * 1024, 48 * 1024 * 1024


def _round_up8(v):
    return ((v + 7) // 8) * 8


def _choose_tile_rows(n_rows, row_bytes_io, f32_tmp_cols, resident_bytes, budget):
    """Row tile (multiple of 8, or == n_rows when tiny) for the grid's row axis."""
    if n_rows <= 8:
        return max(int(n_rows), 1)
    avail = max(budget - resident_bytes, 2 * 1024 * 1024)
    # per row: double-buffered input + output blocks + f32 intermediates (h and y).
    per_row = 2 * 2 * row_bytes_io + 4 * f32_tmp_cols
    tile = avail // per_row
    if n_rows >= 32:
        # >= 4 grid steps: v7x megacore sharding + DMA/compute overlap.
        tile = min(tile, -(-n_rows // 4))
    tile = int(min(max(tile, 8), 4096, n_rows))
    tile = max(8, (tile // 8) * 8)
    # Re-balance so the trailing tile is not tiny (avoid a mostly-masked tile).
    steps = max(1, -(-n_rows // tile))
    return max(8, _round_up8(-(-n_rows // steps)))


# ---------------------------------------------------------------------------
# Path A: fused block-weight kernel (memory-bound / small-dim regime).
# ---------------------------------------------------------------------------
def _fused_kernel(x_ref, w1_ref, b1_ref, w2_ref, b2_ref, o_ref, *, exact_gelu):
    # x_ref: (tile_n, T) natural interleaved rows; weights are the exact
    # block-structured fold of all `sampling` branch MLPs.
    x = x_ref[...]
    h = jnp.dot(x, w1_ref[...], preferred_element_type=jnp.float32) + b1_ref[...]
    g = _gelu(h, exact_gelu).astype(w2_ref.dtype)
    y = jnp.dot(g, w2_ref[...], preferred_element_type=jnp.float32) + b2_ref[...]
    o_ref[...] = y.astype(o_ref.dtype)


def _pack_fused_params(w1, b1, w2, b2):
    """Fold the stride-s branch structure into dense [T, s*H] / [s*H, T] weights.

    W1_big[k*s + idx, idx*H + j] = w1[idx][k, j]
    W2_big[idx*H + j, k*s + idx] = w2[idx][j, k]
    (numerically exact: the added entries are structural zeros)
    """
    s, tin, hid = w1.shape
    t, sh = s * tin, s * hid
    w1_big = jnp.zeros((t, sh), dtype=w1.dtype)
    w2_big = jnp.zeros((sh, t), dtype=w2.dtype)
    for idx in range(s):
        w1_big = w1_big.at[idx::s, idx * hid:(idx + 1) * hid].set(w1[idx])
        w2_big = w2_big.at[idx * hid:(idx + 1) * hid, idx::s].set(w2[idx])
    b1_big = b1.reshape(1, sh)                   # [idx*H + j]  = b1[idx, j]
    b2_big = jnp.transpose(b2).reshape(1, t)     # [k*s + idx]  = b2[idx, k]
    return w1_big, b1_big, w2_big, b2_big


@functools.partial(jax.jit, static_argnames=("exact_gelu",))
def _fused_forward(x, w1_big, b1_big, w2_big, b2_big, *, exact_gelu=True):
    B, C, T = x.shape
    sH = w1_big.shape[1]
    N = B * C
    x2 = x.reshape(N, T)                         # leading-dim merge only; no HBM transpose
    itemsize = x.dtype.itemsize

    budget, vmem_limit = _vmem_budget_and_limit()
    resident = (2 * T * sH + sH + T) * itemsize  # single-buffered weights + biases
    tile_n = _choose_tile_rows(N, T * itemsize, sH + T, resident, budget)
    grid = (pl.cdiv(N, tile_n),)

    y2 = pl.pallas_call(
        functools.partial(_fused_kernel, exact_gelu=exact_gelu),
        out_shape=jax.ShapeDtypeStruct((N, T), x.dtype),
        grid_spec=pltpu.PrefetchScalarGridSpec(
            num_scalar_prefetch=0,
            grid=grid,
            in_specs=[
                pl.BlockSpec((tile_n, T), lambda i: (i, 0)),
                # Grid-invariant weights/biases: single-buffer them (VMEM resident).
                pl.BlockSpec((T, sH), lambda i: (0, 0), pipeline_mode=pl.Buffered(1)),
                pl.BlockSpec((1, sH), lambda i: (0, 0), pipeline_mode=pl.Buffered(1)),
                pl.BlockSpec((sH, T), lambda i: (0, 0), pipeline_mode=pl.Buffered(1)),
                pl.BlockSpec((1, T), lambda i: (0, 0), pipeline_mode=pl.Buffered(1)),
            ],
            out_specs=pl.BlockSpec((tile_n, T), lambda i: (i, 0)),
        ),
        compiler_params=pltpu.CompilerParams(
            dimension_semantics=("parallel",),
            vmem_limit_bytes=vmem_limit,
        ),
    )(x2, w1_big, b1_big, w2_big, b2_big)
    return y2.reshape(B, C, T)


# ---------------------------------------------------------------------------
# Path B: per-branch kernel (compute-bound regime; no structural-zero FLOPs).
# ---------------------------------------------------------------------------
def _branch_kernel(x_ref, w1_ref, b1_ref, w2_ref, b2_ref, o_ref, *, exact_gelu):
    # One (branch, row-tile) grid step: plain 2-D MLP on de-interleaved rows.
    x = x_ref[0]
    h = jnp.dot(x, w1_ref[0], preferred_element_type=jnp.float32) + b1_ref[0]
    g = _gelu(h, exact_gelu).astype(w2_ref.dtype)
    y = jnp.dot(g, w2_ref[0], preferred_element_type=jnp.float32) + b2_ref[0]
    o_ref[0] = y.astype(o_ref.dtype)


@functools.partial(jax.jit, static_argnames=("sampling", "exact_gelu"))
def _branch_forward(x, w1, b1r, w2, b2r, *, sampling, exact_gelu=True):
    B, C, T = x.shape
    s = sampling
    Tin = T // s
    H = w1.shape[-1]
    N = B * C
    itemsize = x.dtype.itemsize

    # Branch-major de-interleave: xb[idx, n, k] = x[n, k*s + idx]  (one XLA pass).
    xb = x.reshape(N, Tin, s).transpose(2, 0, 1)            # (s, N, Tin)

    budget, vmem_limit = _vmem_budget_and_limit()
    resident = 2 * (2 * Tin * H + H + Tin) * itemsize       # double-buffered branch weights
    tile_n = _choose_tile_rows(N, Tin * itemsize, H + Tin, resident, budget)
    grid = (s, pl.cdiv(N, tile_n))                          # branch outer -> weights DMA'd s times

    yb = pl.pallas_call(
        functools.partial(_branch_kernel, exact_gelu=exact_gelu),
        out_shape=jax.ShapeDtypeStruct((s, N, Tin), x.dtype),
        grid_spec=pltpu.PrefetchScalarGridSpec(
            num_scalar_prefetch=0,
            grid=grid,
            in_specs=[
                pl.BlockSpec((1, tile_n, Tin), lambda b, i: (b, i, 0)),
                pl.BlockSpec((1, Tin, H), lambda b, i: (b, 0, 0)),
                pl.BlockSpec((1, 1, H), lambda b, i: (b, 0, 0)),
                pl.BlockSpec((1, H, Tin), lambda b, i: (b, 0, 0)),
                pl.BlockSpec((1, 1, Tin), lambda b, i: (b, 0, 0)),
            ],
            out_specs=pl.BlockSpec((1, tile_n, Tin), lambda b, i: (b, i, 0)),
        ),
        compiler_params=pltpu.CompilerParams(
            dimension_semantics=("parallel", "parallel"),
            vmem_limit_bytes=vmem_limit,
        ),
    )(xb, w1, b1r, w2, b2r)

    # Re-interleave: y[n, k*s + idx] = yb[idx, n, k]  (one XLA pass).
    return yb.transpose(1, 2, 0).reshape(B, C, T)


# ---------------------------------------------------------------------------
# Public API: pack once (model init), return a fast jitted forward(x).
# ---------------------------------------------------------------------------
def make_factorized_temporal_mixing(w1, b1, w2, b2, *, sampling, mode="auto",
                                    exact_gelu=True):
    """w1: [s, T//s, H]; b1: [s, H]; w2: [s, H, T//s]; b2: [s, T//s]."""
    s = sampling
    assert w1.shape[0] == s and w2.shape[0] == s
    _, tin, hid = w1.shape
    t = s * tin

    if mode == "auto":
        budget, _ = _vmem_budget_and_limit()
        fused_weight_bytes = 2 * t * (s * hid) * jnp.dtype(w1.dtype).itemsize
        compute_bound = tin >= 128 and hid >= 128
        mode = "branch" if (s > 1 and (compute_bound or
                                       fused_weight_bytes > budget // 2)) else "fused"

    if mode == "fused":
        packed = _pack_fused_params(w1, b1, w2, b2)          # one-time, outside jit

        def forward(x):
            return _fused_forward(x, *packed, exact_gelu=exact_gelu)
    elif mode == "branch":
        b1r = b1.reshape(s, 1, hid)
        b2r = b2.reshape(s, 1, tin)

        def forward(x):
            return _branch_forward(x, w1, b1r, w2, b2r, sampling=s,
                                   exact_gelu=exact_gelu)
    else:
        raise ValueError(f"unknown mode: {mode!r}")
    return forward


# ---------------------------------------------------------------------------
# Pure-JAX reference mirroring the PyTorch module (per-branch MLPs).
# ---------------------------------------------------------------------------
def _reference(x, w1, b1, w2, b2, sampling):
    y = jnp.zeros_like(x)
    for idx in range(sampling):
        xi = x[:, :, idx::sampling]                          # [B, C, T//s]
        h = xi @ w1[idx] + b1[idx]
        g = 0.5 * h * (1.0 + jax.lax.erf(h / jnp.sqrt(2.0)))
        yi = g @ w2[idx] + b2[idx]
        y = y.at[:, :, idx::sampling].set(yi)
    return y


if __name__ == "__main__":
    # Small shapes consistent with the module: x is [B, C, T] with T = input_dim.
    B, C, T = 2, 4, 16
    sampling = 4
    mlp_dim = 32
    Tin = T // sampling

    key = jax.random.PRNGKey(0)
    kx, k1, k2, k3, k4 = jax.random.split(key, 5)

    x = jax.random.normal(kx, (B, C, T), dtype=jnp.float32)
    w1 = jax.random.normal(k1, (sampling, Tin, mlp_dim), dtype=jnp.float32) * 0.1
    b1 = jax.random.normal(k2, (sampling, mlp_dim), dtype=jnp.float32) * 0.1
    w2 = jax.random.normal(k3, (sampling, mlp_dim, Tin), dtype=jnp.float32) * 0.1
    b2 = jax.random.normal(k4, (sampling, Tin), dtype=jnp.float32) * 0.1

    ref = _reference(x, w1, b1, w2, b2, sampling)

    # Fused block-weight path (what "auto" picks at these small, memory-bound shapes).
    fwd_fused = make_factorized_temporal_mixing(w1, b1, w2, b2, sampling=sampling,
                                                mode="fused")
    out_fused = jax.block_until_ready(fwd_fused(x))
    assert out_fused.shape == x.shape
    assert jnp.allclose(out_fused, ref, atol=1e-5, rtol=1e-4), "fused path mismatch"

    # Per-branch compute-bound path, validated on the same data.
    fwd_branch = make_factorized_temporal_mixing(w1, b1, w2, b2, sampling=sampling,
                                                 mode="branch")
    out_branch = jax.block_until_ready(fwd_branch(x))
    assert jnp.allclose(out_branch, ref, atol=1e-5, rtol=1e-4), "branch path mismatch"

    # Auto dispatch sanity check.
    fwd_auto = make_factorized_temporal_mixing(w1, b1, w2, b2, sampling=sampling)
    out_auto = jax.block_until_ready(fwd_auto(x))
    assert jnp.allclose(out_auto, ref, atol=1e-5, rtol=1e-4), "auto path mismatch"

    print("KERNEL_OK")
</pallas_src>

<mosaic_0001>
module attributes {stable_mosaic.version = 11 : i64} {
  func.func @_fused_kernel(%arg0: i32, %arg1: memref<8x16xf32, #tpu.memory_space<vmem>>, %arg2: memref<16x128xf32, #tpu.memory_space<vmem>>, %arg3: memref<1x128xf32, #tpu.memory_space<vmem>>, %arg4: memref<128x16xf32, #tpu.memory_space<vmem>>, %arg5: memref<1x16xf32, #tpu.memory_space<vmem>>, %arg6: memref<8x16xf32, #tpu.memory_space<vmem>>) attributes {dimension_semantics = [#tpu.dimension_semantics<parallel>], iteration_bounds = array<i64: 1>, scalar_prefetch = 0 : i64, scratch_operands = 0 : i64, tpu.core_type = #tpu.core_type<tc>, window_params = [{transform_indices = @transform_0, window_bounds = array<i64: 8, 16>}, {pipeline_mode = #tpu.pipeline_mode<synchronous>, transform_indices = @transform_1, window_bounds = array<i64: 16, 128>}, {pipeline_mode = #tpu.pipeline_mode<synchronous>, transform_indices = @transform_2, window_bounds = array<i64: 1, 128>}, {pipeline_mode = #tpu.pipeline_mode<synchronous>, transform_indices = @transform_3, window_bounds = array<i64: 128, 16>}, {pipeline_mode = #tpu.pipeline_mode<synchronous>, transform_indices = @transform_4, window_bounds = array<i64: 1, 16>}, {transform_indices = @transform_5, window_bounds = array<i64: 8, 16>}]} {
    %c0 = arith.constant 0 : index
    %c0_0 = arith.constant 0 : index
    %0 = vector.load %arg1[%c0, %c0_0] : memref<8x16xf32, #tpu.memory_space<vmem>>, vector<8x16xf32>
    %c0_1 = arith.constant 0 : index
    %c0_2 = arith.constant 0 : index
    %1 = vector.load %arg2[%c0_1, %c0_2] : memref<16x128xf32, #tpu.memory_space<vmem>>, vector<16x128xf32>
    %cst = arith.constant dense<0.000000e+00> : vector<8x128xf32>
    %2 = tpu.matmul %0, %1, %cst {dimension_numbers = #tpu.dot_dimension_numbers<[1], [0], [0], [1], [0, 0, 1, 1], [], []>} : vector<8x16xf32>, vector<16x128xf32>, vector<8x128xf32> -> vector<8x128xf32>
    %c0_3 = arith.constant 0 : index
    %c0_4 = arith.constant 0 : index
    %3 = vector.load %arg3[%c0_3, %c0_4] : memref<1x128xf32, #tpu.memory_space<vmem>>, vector<1x128xf32>
    %4 = vector.broadcast %3 : vector<1x128xf32> to vector<8x128xf32>
    %5 = arith.addf %2, %4 : vector<8x128xf32>
    %cst_5 = arith.constant 5.000000e-01 : f32
    %6 = vector.broadcast %cst_5 : f32 to vector<8x128xf32>
    %7 = arith.mulf %6, %5 : vector<8x128xf32>
    %cst_6 = arith.constant 0.707106769 : f32
    %8 = vector.broadcast %cst_6 : f32 to vector<8x128xf32>
    %9 = arith.mulf %5, %8 : vector<8x128xf32>
    %10 = math.erf %9 : vector<8x128xf32>
    %cst_7 = arith.constant 1.000000e+00 : f32
    %11 = vector.broadcast %cst_7 : f32 to vector<8x128xf32>
    %12 = arith.addf %11, %10 : vector<8x128xf32>
    %13 = arith.mulf %7, %12 : vector<8x128xf32>
    %c0_8 = arith.constant 0 : index
    %c0_9 = arith.constant 0 : index
    %14 = vector.load %arg4[%c0_8, %c0_9] : memref<128x16xf32, #tpu.memory_space<vmem>>, vector<128x16xf32>
    %cst_10 = arith.constant dense<0.000000e+00> : vector<8x16xf32>
    %15 = tpu.matmul %13, %14, %cst_10 {dimension_numbers = #tpu.dot_dimension_numbers<[1], [0], [0], [1], [0, 0, 1, 1], [], []>} : vector<8x128xf32>, vector<128x16xf32>, vector<8x16xf32> -> vector<8x16xf32>
    %c0_11 = arith.constant 0 : index
    %c0_12 = arith.constant 0 : index
    %16 = vector.load %arg5[%c0_11, %c0_12] : memref<1x16xf32, #tpu.memory_space<vmem>>, vector<1x16xf32>
    %17 = vector.broadcast %16 : vector<1x16xf32> to vector<8x16xf32>
    %18 = arith.addf %15, %17 : vector<8x16xf32>
    %c0_13 = arith.constant 0 : index
    %c0_14 = arith.constant 0 : index
    %19 = vector.load %arg6[%c0_13, %c0_14] : memref<8x16xf32, #tpu.memory_space<vmem>>, vector<8x16xf32>
    tpu.vector_store %arg6[%c0_13, %c0_14], %18 {strides = array<i32>} : memref<8x16xf32, #tpu.memory_space<vmem>>, vector<8x16xf32>,
    return
  }
  func.func @transform_0(%arg0: i32) -> (i32, i32) {
    %c0_i32 = arith.constant 0 : i32
    %c0_i32_0 = arith.constant 0 : i32
    return %arg0, %c0_i32 : i32, i32
  }
  func.func @transform_1(%arg0: i32) -> (i32, i32) {
    %c0_i32 = arith.constant 0 : i32
    %c0_i32_0 = arith.constant 0 : i32
    %c0_i32_1 = arith.constant 0 : i32
    return %c0_i32, %c0_i32_0 : i32, i32
  }
  func.func @transform_2(%arg0: i32) -> (i32, i32) {
    %c0_i32 = arith.constant 0 : i32
    %c0_i32_0 = arith.constant 0 : i32
    %c0_i32_1 = arith.constant 0 : i32
    return %c0_i32, %c0_i32_0 : i32, i32
  }
  func.func @transform_3(%arg0: i32) -> (i32, i32) {
    %c0_i32 = arith.constant 0 : i32
    %c0_i32_0 = arith.constant 0 : i32
    %c0_i32_1 = arith.constant 0 : i32
    return %c0_i32, %c0_i32_0 : i32, i32
  }
  func.func @transform_4(%arg0: i32) -> (i32, i32) {
    %c0_i32 = arith.constant 0 : i32
    %c0_i32_0 = arith.constant 0 : i32
    %c0_i32_1 = arith.constant 0 : i32
    return %c0_i32, %c0_i32_0 : i32, i32
  }
  func.func @transform_5(%arg0: i32) -> (i32, i32) {
    %c0_i32 = arith.constant 0 : i32
    %c0_i32_0 = arith.constant 0 : i32
    return %arg0, %c0_i32 : i32, i32
  }
}

</mosaic_0001>

<llo_original>
// kernel: _fused_forward.1
$region0: #{_fused_forward.1}
  #allocation0 [shape = 'u32[]', space=smem, size = 0x4, offset = 0x4, fixed_abs, tag = 'smem constant byte address 0x4 - core index']
  #allocation1 [shape = 'u32[72,128]{1,0:T(1,128)}', space=vmem, size = 0x9000, scoped, tag = 'internal scratch']
  %s0 = inlined_call_operand.vmem [shape: f32[8,16], index: 0, kind: input, shape index: {}]
  %s1 = inlined_call_operand.vmem [shape: f32[16,128], index: 1, kind: input, shape index: {}]
  %s2 = inlined_call_operand.vmem [shape: f32[1,128], index: 2, kind: input, shape index: {}]
  %s3 = inlined_call_operand.vmem [shape: f32[128,16], index: 3, kind: input, shape index: {}]
  %s4 = inlined_call_operand.vmem [shape: f32[1,16], index: 4, kind: input, shape index: {}]
  %s5 = inlined_call_operand.hbm [shape: f32[8,16], index: 5, kind: output, shape index: {}]
  %s6 = sld [smem:[#allocation0]]
  $region30: #{_fused_forward.1} parent=0
    _
  %s8 = ssub.s32 1, %s6
  %s9 = scalar_select 0, %s8, %s6
  $region1: #{_fused_forward.1} parent=0
    #allocation2 [shape = 'u8[4096]{0}', space=vmem, size = 0x1000, scoped, tag = 'output window, operand 0, single buffered']
    #allocation3 [shape = 's32[1]{0}', space=sflag, size = 0x4, scoped, tag = 'scoped memory for _fused_forward.1']
    %10 = vsyncpa [#allocation3], 0
    // Predicated region
    $region2: #{_fused_forward.1} parent=1 // pred_check
      _
    $region3: #{_fused_forward.1} parent=1 // pred_check_branch
      %12 = sbr.rel (0) target = $region5
    $region4: #{_fused_forward.1} parent=1 // pred_region
      _
    $region5: #{_fused_forward.1} parent=1 // pred_fallthru
      _
    // Predicated region
    $region6: #{_fused_forward.1} parent=1 // pred_check
      _
    $region7: #{_fused_forward.1} parent=1 // pred_check_branch
      %14 = sbr.rel (0) target = $region9
    $region8: #{_fused_forward.1} parent=1 // pred_region
      _
    $region9: #{_fused_forward.1} parent=1 // pred_fallthru
      _
    // Predicated region
    $region10: #{_fused_forward.1} parent=1 // pred_check
      _
    $region11: #{_fused_forward.1} parent=1 // pred_check_branch
      %16 = sbr.rel (0) target = $region13
    $region12: #{_fused_forward.1} parent=1 // pred_region
      _
    $region13: #{_fused_forward.1} parent=1 // pred_fallthru
      _
    // Predicated region
    $region14: #{_fused_forward.1} parent=1 // pred_check
      _
    $region15: #{_fused_forward.1} parent=1 // pred_check_branch
      %18 = sbr.rel (0) target = $region17
    $region16: #{_fused_forward.1} parent=1 // pred_region
      _
    $region17: #{_fused_forward.1} parent=1 // pred_fallthru
      _
    // Predicated region
    $region18: #{_fused_forward.1} parent=1 // pred_check
      _
    $region19: #{_fused_forward.1} parent=1 // pred_check_branch
      %20 = sbr.rel (0) target = $region21
    $region20: #{_fused_forward.1} parent=1 // pred_region
      _
    $region21: #{_fused_forward.1} parent=1 // pred_fallthru
      _
    %v21 = vld [vmem:[%s0] sm:$0xff]
    %v22 = vld [vmem:[%s1] sm:$0xff]
    %v23 = vld [vmem:[%s1 + $0x8] sm:$0xff]
    %v24 = vld [vmem:[%s2] sm:$0x1]
    %v26 = vperm.slane %v24, 0
    %vm28 = vcmask 130048
    %v30 = vsel %vm28, %v21, 0
    %32 = vmatpush.msra.mxu0 0.0
    %33 = vmatpush.msra.mxu0 0.0
    %34 = vmatpush.msra.mxu0 0.0
    %35 = vmatpush.msra.mxu0 0.0
    %36 = vmatpush.msra.mxu0 0.0
    %37 = vmatpush.msra.mxu0 0.0
    %38 = vmatpush.msra.mxu0 0.0
    %39 = vmatpush.msra.mxu0 0.0
    %40 = vmatpush.msra.mxu0 0.0
    %41 = vmatpush.msra.mxu0 0.0
    %42 = vmatpush.msra.mxu0 0.0
    %43 = vmatpush.msra.mxu0 0.0
    %44 = vmatpush.msra.mxu0 0.0
    %45 = vmatpush.msra.mxu0 0.0
    %46 = vmatpush.msra.mxu0 %v23
    %47 = vmatpush.msra.mxu0 %v22
    %48 = vmatmul.f32.gmra.mxu0 %v30
    %v49 = vpop.f32.mrf.mxu0
    %v50 = vadd.f32 %v26, %v49
    %51 = vdwg.mxu0
    %v52 = vmul.f32 %v50, 0.5
    %v53 = vmul.f32 %v50, 0.70710677
    %v54 = vmul.f32 %v53, %v53
    %v55 = vmin.f32 16.0, %v54
    %v56 = vmul.f32 %v55, 2.1237322e-06
    %v57 = vadd.f32 %v56, 0.00028619796
    %v58 = vmul.f32 %v55, %v57
    %v59 = vadd.f32 %v58, 0.0036580483
    %v60 = vmul.f32 %v55, %v59
    %v61 = vadd.f32 %v60, 0.05243302
    %v62 = vmul.f32 %v55, %v61
    %v63 = vadd.f32 %v62, 0.18741608
    %v64 = vmul.f32 %v55, %v63
    %v65 = vadd.f32 %v64, 1.1283791
    %v66 = vmul.f32 %v53, %v65
    %v67 = vmul.f32 %v55, 3.8918573e-05
    %v68 = vadd.f32 %v67, 0.001143296
    %v69 = vmul.f32 %v55, %v68
    %v70 = vadd.f32 %v69, 0.014752088
    %v71 = vmul.f32 %v55, %v70
    %v72 = vadd.f32 %v71, 0.112945676
    %v73 = vmul.f32 %v55, %v72
    %v74 = vadd.f32 %v73, 0.4994258
    %v75 = vmul.f32 %v55, %v74
    %v76 = vadd.f32 %v75, 1.0
    %v77 = vrcp.pop %v76
    %v78 = vmul.f32 %v76, %v77
    %v79 = vsub.f32 1.0, %v78
    %v80 = vmul.f32 %v77, %v79
    %v81 = vadd.f32 %v77, %v80
    %vm82 = vweird.f32 %v76
    %vm83 = vweird.f32 %v77
    %vm84 = vmor %vm82, %vm83
    %v85 = vsel %vm84, %v77, %v81
    %v86 = vand.u32 2147483647, %v76
    %vm87 = vcmp.eq.f32.partialorder %v86, 8.507059e+37
    %v88 = vand.u32 %v76, 2147483648
    %v89 = vor.u32 1.1754944e-38, %v88
    %v90 = vsel %vm87, %v89, %v85
    %v91 = vmul.f32 %v66, %v90
    %v92 = vmin.f32 %v91, 1.0
    %v93 = vmax.f32 %v92, -1.0
    %v94 = vadd.f32 %v93, 1.0
    %v95 = vmul.f32 %v52, %v94
    %v96 = vld [vmem:[%s3] sm:$0xff]
    %v97 = vld [vmem:[%s3 + $0x8] sm:$0xff]
    %v98 = vld [vmem:[%s3 + $0x10] sm:$0xff]
    %v99 = vld [vmem:[%s3 + $0x18] sm:$0xff]
    %v100 = vld [vmem:[%s3 + $0x20] sm:$0xff]
    %v101 = vld [vmem:[%s3 + $0x28] sm:$0xff]
    %v102 = vld [vmem:[%s3 + $0x30] sm:$0xff]
    %v103 = vld [vmem:[%s3 + $0x38] sm:$0xff]
    %v104 = vld [vmem:[%s3 + $0x40] sm:$0xff]
    %v105 = vld [vmem:[%s3 + $0x48] sm:$0xff]
    %v106 = vld [vmem:[%s3 + $0x50] sm:$0xff]
    %v107 = vld [vmem:[%s3 + $0x58] sm:$0xff]
    %v108 = vld [vmem:[%s3 + $0x60] sm:$0xff]
    %v109 = vld [vmem:[%s3 + $0x68] sm:$0xff]
    %v110 = vld [vmem:[%s3 + $0x70] sm:$0xff]
    %v111 = vld [vmem:[%s3 + $0x78] sm:$0xff]
    %v112 = vld [vmem:[%s4] sm:$0x1]
    %v114 = vperm.slane %v112, 0
    %116 = vmatpush.msra.mxu0 %v111
    %117 = vmatpush.msra.mxu0 %v110
    %118 = vmatpush.msra.mxu0 %v109
    %119 = vmatpush.msra.mxu0 %v108
    %120 = vmatpush.msra.mxu0 %v107
    %121 = vmatpush.msra.mxu0 %v106
    %122 = vmatpush.msra.mxu0 %v105
    %123 = vmatpush.msra.mxu0 %v104
    %124 = vmatpush.msra.mxu0 %v103
    %125 = vmatpush.msra.mxu0 %v102
    %126 = vmatpush.msra.mxu0 %v101
    %127 = vmatpush.msra.mxu0 %v100
    %128 = vmatpush.msra.mxu0 %v99
    %129 = vmatpush.msra.mxu0 %v98
    %130 = vmatpush.msra.mxu0 %v97
    %131 = vmatpush.msra.mxu0 %v96
    %132 = vmatmul.f32.gmra.mxu0 %v95
    %v133 = vpop.f32.mrf.mxu0
    %v134 = vadd.f32 %v114, %v133
    %135 = vdwg.mxu0
    %136 = vst.msk [vmem:[#allocation2] sm:$0xff] %vm28, %v134
    // Predicated region
    $region22: #{_fused_forward.1} parent=1 // pred_check
      _
    $region23: #{_fused_forward.1} parent=1 // pred_check_branch
      %138 = sbr.rel (0) target = $region25
    $region24: #{_fused_forward.1} parent=1 // pred_region
      %140 = vsyncadd [#allocation3], 0
      %s142 = sshll.u32 [#allocation2], 4
      %s143 = int_to_ptr.vmem [resolvable:$true] %s142
      %s144 = sshll.u32 %s5, 4
      %s145 = int_to_ptr.hbm [resolvable:$true] %s144
      %147 = dma.vmem_to_hbm [thread:$0]  %s143, 128, %s145, [#allocation3]
    $region25: #{_fused_forward.1} parent=1 // pred_fallthru
      _
    // Predicated region
    $region26: #{_fused_forward.1} parent=1 // pred_check
      _
    $region27: #{_fused_forward.1} parent=1 // pred_check_branch
      %149 = sbr.rel (0) target = $region29
    $region28: #{_fused_forward.1} parent=1 // pred_region
      %151 = dma.done [#allocation3], 128
    $region29: #{_fused_forward.1} parent=1 // pred_fallthru
      _
    %152 = vsyncpa [#allocation3], 1

</llo_original>
